<compile_context>
chip_gen: v7x
topology: tpu7x:2x2x1
jax: 0.10.0
libtpu: 0.0.40
codegen_flags: <defaults>
</compile_context>

<pallas_src>
import jax
import jax.numpy as jnp
from jax.experimental import pallas as pl
from jax.experimental.pallas import tpu as pltpu

_MIB = 1024 * 1024


def _selfattn_kernel(w_ref, x_ref, o_ref, m_ref, l_ref, acc_ref):
    """Online-softmax attention pooling over T tiles.

    w_ref  : (1, D)        scorer weight row (resident; constant index_map)
    x_ref  : (TB, TT, D)   current (batch-block, T-tile) of the input
    o_ref  : (TB, D)       pooled context vectors (written on the last T tile)
    m_ref  : (TB, 1)  f32  running max of the logits
    l_ref  : (TB, 1)  f32  running softmax denominator
    acc_ref: (TB, D)  f32  running sum_t exp(logit_t - m) * x[t]
    """
    t_idx = pl.program_id(1)

    @pl.when(t_idx == 0)
    def _():
        m_ref[...] = jnp.full(m_ref.shape, -jnp.inf, dtype=jnp.float32)
        l_ref[...] = jnp.zeros(l_ref.shape, dtype=jnp.float32)
        acc_ref[...] = jnp.zeros(acc_ref.shape, dtype=jnp.float32)

    x = x_ref[...]                              # native dtype feeds the MXU
    tb, tt, d = x.shape

    # The scorer weight acts as a single shared "query" per sequence.  The
    # scalar Linear bias adds the same constant to every logit of a sequence
    # and cancels in the softmax (shift invariance) -- it never enters here.
    wq = jnp.broadcast_to(
        w_ref[...].astype(x.dtype).reshape(1, 1, d), (tb, 1, d))

    # logits[b, 0, k] = <w, x[b, k, :]>   (MXU, f32 accumulation)
    s = jnp.einsum("bqd,bkd->bqk", wq, x,
                   preferred_element_type=jnp.float32)          # (TB, 1, TT)

    m_prev = m_ref[...].reshape(tb, 1, 1)
    l_prev = l_ref[...].reshape(tb, 1, 1)
    acc_prev = acc_ref[...].reshape(tb, 1, d)

    m_new = jnp.maximum(m_prev, jnp.max(s, axis=-1, keepdims=True))  # (TB,1,1)
    alpha = jnp.exp(m_prev - m_new)                                  # (TB,1,1)
    p = jnp.exp(s - m_new)                                           # (TB,1,TT)

    l_new = alpha * l_prev + jnp.sum(p, axis=-1, keepdims=True)
    acc_new = alpha * acc_prev + jnp.einsum(
        "bqk,bkd->bqd", p.astype(x.dtype), x,
        preferred_element_type=jnp.float32)                          # (TB,1,D)

    m_ref[...] = m_new.reshape(tb, 1)
    l_ref[...] = l_new.reshape(tb, 1)
    acc_ref[...] = acc_new.reshape(tb, d)

    @pl.when(t_idx == pl.num_programs(1) - 1)
    def _():
        # Exact divide: approx reciprocal's ~2^-12 error would exceed the
        # 1e-5 tolerance; the kernel is DMA-bound so this is hidden anyway.
        o_ref[...] = (acc_ref[...] / l_ref[...]).astype(o_ref.dtype)


def _round_up(x, m):
    return ((x + m - 1) // m) * m


def _aligned_divisors(n):
    """Divisors of n usable as the second-to-last block dim: multiples of 8,
    plus n itself (full dim)."""
    vals = {n}
    d = 8
    while d < n:
        if n % d == 0:
            vals.add(d)
        d += 8
    return sorted(vals)


def _gen_config():
    """(vmem_target, default_scoped, ceiling, n_tensorcores) per TPU gen."""
    try:
        kind = jax.devices()[0].device_kind.lower()
    except Exception:
        kind = ""
    if "v7" in kind:
        # 64 MiB physical VMEM, 2 TensorCores -> stay well under ~48 MiB.
        return 36 * _MIB, 32 * _MIB, 48 * _MIB, 2
    if "v6" in kind:
        return 24 * _MIB, 32 * _MIB, 96 * _MIB, 1
    if "v5e" in kind or "v5 lite" in kind or "v5lite" in kind:
        return 12 * _MIB, 16 * _MIB, 96 * _MIB, 1
    # Unknown chip: conservative (fits a 16 MiB default scoped VMEM).
    return 10 * _MIB, 16 * _MIB, 16 * _MIB, 1


def _vmem_estimate(tb, tt, D, itemsize):
    """Conservative in-flight VMEM bytes: double-buffered blocks + f32 scratch
    + padded in-kernel intermediates (size-1 sublane dims pad to 8)."""
    d_lane = _round_up(D, 128)
    tt_lane = _round_up(tt, 128)
    tb8 = _round_up(tb, 8)
    buf_in = 2 * tb * _round_up(tt, 8) * d_lane * itemsize
    buf_out = 2 * tb8 * d_lane * itemsize
    buf_w = 2 * 8 * d_lane * itemsize
    scratch = tb8 * (d_lane + 2 * 128) * 4
    interm = tb * 8 * (2 * tt_lane + 2 * d_lane) * 4
    return buf_in + buf_out + buf_w + scratch + interm


def _choose_blocks(B, T, D, itemsize, cfg, block_batch=None, block_seq=None):
    vmem_target, _, _, n_cores = cfg
    tbs = [block_batch] if block_batch is not None else _aligned_divisors(B)
    tts = [block_seq] if block_seq is not None else _aligned_divisors(T)

    # Fast path: the largest T tile (whole sequences unless overridden).
    tt = max(tts)
    fit = [tb for tb in tbs if _vmem_estimate(tb, tt, D, itemsize) <= vmem_target]
    if fit:
        if n_cores >= 2 and B >= 2:
            # Prefer an even number (>=2) of batch-axis steps so the
            # "parallel" axis shards evenly across both v7x TensorCores.
            even = [tb for tb in fit if B // tb >= 2 and (B // tb) % 2 == 0]
            if even:
                return max(even), tt
            ge2 = [tb for tb in fit if B // tb >= 2]
            if ge2:
                return max(ge2), tt
        return max(fit), tt

    # Long-sequence path: smallest aligned batch block, stream T tiles with
    # the online-softmax accumulators.
    tb = min(tbs)
    fit_tt = [t for t in tts if _vmem_estimate(tb, t, D, itemsize) <= vmem_target]
    tt = max(fit_tt) if fit_tt else min(tts)
    return tb, tt


def self_attn(inp, weight, bias=None, *, block_batch=None, block_seq=None):
    """inp: (B, T, D); weight: (1, D) or (D,); bias: (1,). Returns (B, D).

    The scalar bias of nn.Linear(dhid, 1) cancels in the softmax
    (softmax(x + c) == softmax(x)), so it never enters the kernel.
    Tip: pass `inp` in bfloat16 to halve HBM traffic; the softmax math stays
    in f32 inside the kernel (output dtype follows the input dtype).
    """
    del bias
    B, T, D = inp.shape
    itemsize = inp.dtype.itemsize
    cfg = _gen_config()
    _, default_scoped, ceiling, _ = cfg

    tb, tt = _choose_blocks(B, T, D, itemsize, cfg, block_batch, block_seq)
    assert B % tb == 0, "batch block must divide B"
    assert T % tt == 0, "sequence block must divide T"
    grid = (B // tb, T // tt)

    est = _vmem_estimate(tb, tt, D, itemsize)
    vmem_limit = int(max(default_scoped, min(est + 8 * _MIB, ceiling)))

    cost = pl.CostEstimate(
        flops=4 * B * T * D,
        transcendentals=B * T,
        bytes_accessed=(B * T * D + B * D + D) * itemsize,
    )

    return pl.pallas_call(
        _selfattn_kernel,
        out_shape=jax.ShapeDtypeStruct((B, D), inp.dtype),
        grid_spec=pltpu.PrefetchScalarGridSpec(
            num_scalar_prefetch=0,
            grid=grid,
            in_specs=[
                pl.BlockSpec((1, D), lambda i, j: (0, 0)),        # weight (resident)
                pl.BlockSpec((tb, tt, D), lambda i, j: (i, j, 0)),  # input tile
            ],
            out_specs=pl.BlockSpec((tb, D), lambda i, j: (i, 0)),
            scratch_shapes=[
                pltpu.VMEM((tb, 1), jnp.float32),   # running max
                pltpu.VMEM((tb, 1), jnp.float32),   # running denominator
                pltpu.VMEM((tb, D), jnp.float32),   # running weighted sum
            ],
        ),
        compiler_params=pltpu.CompilerParams(
            dimension_semantics=("parallel", "arbitrary"),
            vmem_limit_bytes=vmem_limit,
        ),
        cost_estimate=cost,
    )(weight.reshape(1, D).astype(inp.dtype), inp)


def self_attn_ref(inp, weight, bias):
    # Pure-JAX f32 reference mirroring the PyTorch module (bias included).
    x = inp.astype(jnp.float32)
    w = weight.reshape(1, -1).astype(jnp.float32)
    b = bias.astype(jnp.float32)
    logits = jnp.einsum("btd,od->bto", x, w) + b                # (B, T, 1)
    scores = jax.nn.softmax(logits, axis=1)                     # softmax over T
    return jnp.einsum("bto,btd->bod", scores, x)[:, 0, :]       # (B, D)


def _run_case(B, T, D, dtype=jnp.float32, atol=1e-5, **blocks):
    key = jax.random.PRNGKey(0)
    k_inp, k_w, k_b = jax.random.split(key, 3)
    inp = jax.random.normal(k_inp, (B, T, D), dtype=jnp.float32).astype(dtype)
    # nn.Linear(dhid, 1): weight (1, dhid), bias (1,)
    weight = (jax.random.normal(k_w, (1, D), dtype=jnp.float32) * 0.1).astype(dtype)
    bias = (jax.random.normal(k_b, (1,), dtype=jnp.float32) * 0.1).astype(dtype)

    out = jax.block_until_ready(self_attn(inp, weight, bias, **blocks))
    ref = self_attn_ref(inp, weight, bias)
    assert out.shape == (B, D)
    err = float(jnp.max(jnp.abs(out.astype(jnp.float32) - ref)))
    assert err <= atol, (B, T, D, str(dtype), err)
    return out


if __name__ == "__main__":
    _run_case(2, 8, 32)                                   # module-scale shapes
    _run_case(16, 8, 128)                                 # lane-dense batch-blocked path
    _run_case(2, 32, 128, block_batch=2, block_seq=8)     # multi-T-tile online softmax
    _run_case(8, 16, 128, dtype=jnp.bfloat16, atol=2e-2)  # bf16 inputs (half the HBM bytes)
    print("KERNEL_OK")
</pallas_src>

<mosaic_0001>
module attributes {stable_mosaic.version = 11 : i64} {
  func.func @_selfattn_kernel(%arg0: i32, %arg1: i32, %arg2: memref<1x32xf32, #tpu.memory_space<vmem>>, %arg3: memref<2x8x32xf32, #tpu.memory_space<vmem>>, %arg4: memref<2x32xf32, #tpu.memory_space<vmem>>, %arg5: memref<2x1xf32, #tpu.memory_space<vmem>>, %arg6: memref<2x1xf32, #tpu.memory_space<vmem>>, %arg7: memref<2x32xf32, #tpu.memory_space<vmem>>) attributes {dimension_semantics = [#tpu.dimension_semantics<parallel>, #tpu.dimension_semantics<arbitrary>], iteration_bounds = array<i64: 1, 1>, scalar_prefetch = 0 : i64, scratch_operands = 3 : i64, tpu.core_type = #tpu.core_type<tc>, window_params = [{pipeline_mode = #tpu.pipeline_mode<synchronous>, transform_indices = @transform_0, window_bounds = array<i64: 1, 32>}, {transform_indices = @transform_1, window_bounds = array<i64: 2, 8, 32>}, {transform_indices = @transform_2, window_bounds = array<i64: 2, 32>}]} {
    %c0_i32 = arith.constant 0 : i32
    %0 = arith.cmpi eq, %arg1, %c0_i32 : i32
    %1 = arith.extui %0 : i1 to i32
    %c0_i32_0 = arith.constant 0 : i32
    %2 = arith.cmpi ne, %1, %c0_i32_0 : i32
    scf.if %2 {
      %cst_22 = arith.constant 0xFF800000 : f32
      %40 = vector.broadcast %cst_22 : f32 to vector<2x1xf32>
      %c0_23 = arith.constant 0 : index
      %c0_24 = arith.constant 0 : index
      %41 = vector.load %arg5[%c0_23, %c0_24] : memref<2x1xf32, #tpu.memory_space<vmem>>, vector<2x1xf32>
      tpu.vector_store %arg5[%c0_23, %c0_24], %40 {strides = array<i32>} : memref<2x1xf32, #tpu.memory_space<vmem>>, vector<2x1xf32>,
      %cst_25 = arith.constant 0.000000e+00 : f32
      %42 = vector.broadcast %cst_25 : f32 to vector<2x1xf32>
      %c0_26 = arith.constant 0 : index
      %c0_27 = arith.constant 0 : index
      %43 = vector.load %arg6[%c0_26, %c0_27] : memref<2x1xf32, #tpu.memory_space<vmem>>, vector<2x1xf32>
      tpu.vector_store %arg6[%c0_26, %c0_27], %42 {strides = array<i32>} : memref<2x1xf32, #tpu.memory_space<vmem>>, vector<2x1xf32>,
      %cst_28 = arith.constant 0.000000e+00 : f32
      %44 = vector.broadcast %cst_28 : f32 to vector<2x32xf32>
      %c0_29 = arith.constant 0 : index
      %c0_30 = arith.constant 0 : index
      %45 = vector.load %arg7[%c0_29, %c0_30] : memref<2x32xf32, #tpu.memory_space<vmem>>, vector<2x32xf32>
      tpu.vector_store %arg7[%c0_29, %c0_30], %44 {strides = array<i32>} : memref<2x32xf32, #tpu.memory_space<vmem>>, vector<2x32xf32>,
    } else {
    }
    %c0 = arith.constant 0 : index
    %c0_1 = arith.constant 0 : index
    %c0_2 = arith.constant 0 : index
    %3 = vector.load %arg3[%c0, %c0_1, %c0_2] : memref<2x8x32xf32, #tpu.memory_space<vmem>>, vector<2x8x32xf32>
    %c0_3 = arith.constant 0 : index
    %c0_4 = arith.constant 0 : index
    %4 = vector.load %arg2[%c0_3, %c0_4] : memref<1x32xf32, #tpu.memory_space<vmem>>, vector<1x32xf32>
    %5 = vector.shape_cast %4 : vector<1x32xf32> to vector<1x1x32xf32>
    %6 = vector.shape_cast %5 : vector<1x1x32xf32> to vector<1x1x32xf32>
    %7 = vector.broadcast %6 : vector<1x1x32xf32> to vector<2x1x32xf32>
    "tpu.trace_start"() <{level = 10 : i32, message = "bqd,bkd->bqk"}> : () -> ()
    %cst = arith.constant dense<0.000000e+00> : vector<2x1x8xf32>
    %8 = tpu.matmul %7, %3, %cst {dimension_numbers = #tpu.dot_dimension_numbers<[2], [2], [1], [1], [0, 0, 0, 1, 1, 1], [0], [0]>} : vector<2x1x32xf32>, vector<2x8x32xf32>, vector<2x1x8xf32> -> vector<2x1x8xf32>
    "tpu.trace_stop"() : () -> ()
    %c0_5 = arith.constant 0 : index
    %c0_6 = arith.constant 0 : index
    %9 = vector.load %arg5[%c0_5, %c0_6] : memref<2x1xf32, #tpu.memory_space<vmem>>, vector<2x1xf32>
    %10 = vector.shape_cast %9 : vector<2x1xf32> to vector<2x1x1xf32>
    %c0_7 = arith.constant 0 : index
    %c0_8 = arith.constant 0 : index
    %11 = vector.load %arg6[%c0_7, %c0_8] : memref<2x1xf32, #tpu.memory_space<vmem>>, vector<2x1xf32>
    %12 = vector.shape_cast %11 : vector<2x1xf32> to vector<2x1x1xf32>
    %c0_9 = arith.constant 0 : index
    %c0_10 = arith.constant 0 : index
    %13 = vector.load %arg7[%c0_9, %c0_10] : memref<2x32xf32, #tpu.memory_space<vmem>>, vector<2x32xf32>
    %14 = vector.shape_cast %13 : vector<2x32xf32> to vector<2x1x32xf32>
    %cst_11 = arith.constant dense<0xFF800000> : vector<2x1xf32>
    %15 = vector.multi_reduction <maximumf>, %8, %cst_11 [2] : vector<2x1x8xf32> to vector<2x1xf32>
    %16 = vector.shape_cast %15 : vector<2x1xf32> to vector<2x1x1xf32>
    %17 = arith.maximumf %10, %16 : vector<2x1x1xf32>
    %18 = arith.subf %10, %17 : vector<2x1x1xf32>
    %19 = math.exp %18 : vector<2x1x1xf32>
    %20 = vector.broadcast %17 : vector<2x1x1xf32> to vector<2x1x8xf32>
    %21 = arith.subf %8, %20 : vector<2x1x8xf32>
    %22 = math.exp %21 : vector<2x1x8xf32>
    %23 = arith.mulf %19, %12 : vector<2x1x1xf32>
    %cst_12 = arith.constant dense<0.000000e+00> : vector<2x1xf32>
    %24 = vector.multi_reduction <add>, %22, %cst_12 [2] : vector<2x1x8xf32> to vector<2x1xf32>
    %25 = vector.shape_cast %24 : vector<2x1xf32> to vector<2x1x1xf32>
    %26 = arith.addf %23, %25 : vector<2x1x1xf32>
    %27 = vector.broadcast %19 : vector<2x1x1xf32> to vector<2x1x32xf32>
    %28 = arith.mulf %27, %14 : vector<2x1x32xf32>
    "tpu.trace_start"() <{level = 10 : i32, message = "bqk,bkd->bqd"}> : () -> ()
    %cst_13 = arith.constant dense<0.000000e+00> : vector<2x1x32xf32>
    %29 = tpu.matmul %22, %3, %cst_13 {dimension_numbers = #tpu.dot_dimension_numbers<[2], [1], [1], [2], [0, 0, 0, 1, 1, 2], [0], [0]>} : vector<2x1x8xf32>, vector<2x8x32xf32>, vector<2x1x32xf32> -> vector<2x1x32xf32>
    "tpu.trace_stop"() : () -> ()
    %30 = arith.addf %28, %29 : vector<2x1x32xf32>
    %31 = vector.shape_cast %17 : vector<2x1x1xf32> to vector<2x1xf32>
    %c0_14 = arith.constant 0 : index
    %c0_15 = arith.constant 0 : index
    %32 = vector.load %arg5[%c0_14, %c0_15] : memref<2x1xf32, #tpu.memory_space<vmem>>, vector<2x1xf32>
    tpu.vector_store %arg5[%c0_14, %c0_15], %31 {strides = array<i32>} : memref<2x1xf32, #tpu.memory_space<vmem>>, vector<2x1xf32>,
    %33 = vector.shape_cast %26 : vector<2x1x1xf32> to vector<2x1xf32>
    %c0_16 = arith.constant 0 : index
    %c0_17 = arith.constant 0 : index
    %34 = vector.load %arg6[%c0_16, %c0_17] : memref<2x1xf32, #tpu.memory_space<vmem>>, vector<2x1xf32>
    tpu.vector_store %arg6[%c0_16, %c0_17], %33 {strides = array<i32>} : memref<2x1xf32, #tpu.memory_space<vmem>>, vector<2x1xf32>,
    %35 = vector.shape_cast %30 : vector<2x1x32xf32> to vector<2x32xf32>
    %c0_18 = arith.constant 0 : index
    %c0_19 = arith.constant 0 : index
    %36 = vector.load %arg7[%c0_18, %c0_19] : memref<2x32xf32, #tpu.memory_space<vmem>>, vector<2x32xf32>
    tpu.vector_store %arg7[%c0_18, %c0_19], %35 {strides = array<i32>} : memref<2x32xf32, #tpu.memory_space<vmem>>, vector<2x32xf32>,
    %c0_i32_20 = arith.constant 0 : i32
    %37 = arith.cmpi eq, %arg1, %c0_i32_20 : i32
    %38 = arith.extui %37 : i1 to i32
    %c0_i32_21 = arith.constant 0 : i32
    %39 = arith.cmpi ne, %38, %c0_i32_21 : i32
    scf.if %39 {
      %c0_22 = arith.constant 0 : index
      %c0_23 = arith.constant 0 : index
      %40 = vector.load %arg7[%c0_22, %c0_23] : memref<2x32xf32, #tpu.memory_space<vmem>>, vector<2x32xf32>
      %c0_24 = arith.constant 0 : index
      %c0_25 = arith.constant 0 : index
      %41 = vector.load %arg6[%c0_24, %c0_25] : memref<2x1xf32, #tpu.memory_space<vmem>>, vector<2x1xf32>
      %42 = vector.broadcast %41 : vector<2x1xf32> to vector<2x32xf32>
      %43 = arith.divf %40, %42 : vector<2x32xf32>
      %c0_26 = arith.constant 0 : index
      %c0_27 = arith.constant 0 : index
      %44 = vector.load %arg4[%c0_26, %c0_27] : memref<2x32xf32, #tpu.memory_space<vmem>>, vector<2x32xf32>
      tpu.vector_store %arg4[%c0_26, %c0_27], %43 {strides = array<i32>} : memref<2x32xf32, #tpu.memory_space<vmem>>, vector<2x32xf32>,
    } else {
    }
    return
  }
  func.func @transform_0(%arg0: i32, %arg1: i32) -> (i32, i32) {
    %c0_i32 = arith.constant 0 : i32
    %c0_i32_0 = arith.constant 0 : i32
    %c0_i32_1 = arith.constant 0 : i32
    return %c0_i32, %c0_i32_0 : i32, i32
  }
  func.func @transform_1(%arg0: i32, %arg1: i32) -> (i32, i32, i32) {
    %c0_i32 = arith.constant 0 : i32
    %c0_i32_0 = arith.constant 0 : i32
    return %arg0, %arg1, %c0_i32 : i32, i32, i32
  }
  func.func @transform_2(%arg0: i32, %arg1: i32) -> (i32, i32) {
    %c0_i32 = arith.constant 0 : i32
    %c0_i32_0 = arith.constant 0 : i32
    return %arg0, %c0_i32 : i32, i32
  }
}

</mosaic_0001>

<llo_original>
// kernel: tpu_custom_call.1
$region0: #{tpu_custom_call.1}
  #allocation0 [shape = 'u32[]', space=smem, size = 0x4, offset = 0x4, fixed_abs, tag = 'smem constant byte address 0x4 - core index']
  #allocation1 [shape = 'u32[144,128]{1,0:T(1,128)}', space=vmem, size = 0x12000, scoped, tag = 'internal scratch']
  #allocation2 [shape = 'f32[2,1]{1,0:T(2,128)}', space=vmem, size = 0x400, scoped, tag = 'scratch operand']
  #allocation3 [shape = 'f32[2,1]{1,0:T(2,128)}', space=vmem, size = 0x400, scoped, tag = 'scratch operand']
  #allocation4 [shape = 'f32[2,32]{1,0:T(2,128)}', space=vmem, size = 0x400, scoped, tag = 'scratch operand']
  %s0 = inlined_call_operand.hbm [shape: f32[1,32], index: 0, kind: input, shape index: {}]
  %s1 = inlined_call_operand.hbm [shape: f32[2,8,32], index: 1, kind: input, shape index: {}]
  %s2 = inlined_call_operand.hbm [shape: f32[2,32], index: 2, kind: output, shape index: {}]
  %s3 = sld [smem:[#allocation0]]
  $region34: #{tpu_custom_call.1} parent=0
    _
  %s5 = ssub.s32 1, %s3
  %s6 = scalar_select 0, %s5, %s3
  $region1: #{tpu_custom_call.1} parent=0
    #allocation5 [shape = 'u8[512]{0}', space=vmem, size = 0x400, scoped, tag = 'input window, operand 0, single buffered']
    #allocation6 [shape = 's32[1]{0}', space=sflag, size = 0x4, scoped, tag = 'scoped memory for tpu_custom_call.1']
    #allocation7 [shape = 's32[1]{0}', space=sflag, size = 0x4, scoped, tag = 'scoped memory for tpu_custom_call.1']
    #allocation8 [shape = 'u8[8192]{0}', space=vmem, size = 0x2000, scoped, tag = 'input window, operand 1, single buffered']
    #allocation9 [shape = 's32[1]{0}', space=sflag, size = 0x4, scoped, tag = 'scoped memory for tpu_custom_call.1']
    #allocation10 [shape = 'u8[1024]{0}', space=vmem, size = 0x400, scoped, tag = 'output window, operand 0, single buffered']
    %7 = vsyncpa [#allocation6], 0
    %8 = vsyncpa [#allocation9], 0
    %9 = vsyncpa [#allocation7], 0
    // Predicated region
    $region2: #{tpu_custom_call.1} parent=1 // pred_check
      _
    $region3: #{tpu_custom_call.1} parent=1 // pred_check_branch
      %11 = sbr.rel (0) target = $region5
    $region4: #{tpu_custom_call.1} parent=1 // pred_region
      %s13 = ssub.s32 16, 16
      %14 = vsyncadd [#allocation6], %s13
      %s16 = sshll.u32 [#allocation5], 4
      %s17 = int_to_ptr.vmem [resolvable:$true] %s16
      %19 = dma.hbm_to_vmem [thread:$0]  %s0, 16, %s17, [#allocation6]
    $region5: #{tpu_custom_call.1} parent=1 // pred_fallthru
      _
    // Predicated region
    $region6: #{tpu_custom_call.1} parent=1 // pred_check
      _
    $region7: #{tpu_custom_call.1} parent=1 // pred_check_branch
      %21 = sbr.rel (0) target = $region9
    $region8: #{tpu_custom_call.1} parent=1 // pred_region
      %s23 = ssub.s32 256, 256
      %24 = vsyncadd [#allocation9], %s23
      %s25 = sshll.u32 [#allocation8], 4
      %s26 = int_to_ptr.vmem [resolvable:$true] %s25
      %31 = dma.hbm_to_vmem [thread:$0]  %s1, 256, %s26, [#allocation9], 128, 128, 8
    $region9: #{tpu_custom_call.1} parent=1 // pred_fallthru
      _
    // Predicated region
    $region10: #{tpu_custom_call.1} parent=1 // pred_check
      _
    $region11: #{tpu_custom_call.1} parent=1 // pred_check_branch
      %33 = sbr.rel (0) target = $region13
    $region12: #{tpu_custom_call.1} parent=1 // pred_region
      %34 = dma.done [#allocation6], 16
    $region13: #{tpu_custom_call.1} parent=1 // pred_fallthru
      _
    // Predicated region
    $region14: #{tpu_custom_call.1} parent=1 // pred_check
      _
    $region15: #{tpu_custom_call.1} parent=1 // pred_check_branch
      %36 = sbr.rel (0) target = $region17
    $region16: #{tpu_custom_call.1} parent=1 // pred_region
      %37 = dma.done [#allocation9], 256
    $region17: #{tpu_custom_call.1} parent=1 // pred_fallthru
      _
    %p38 = scmp.eq.s32.totalorder 0, 0
    // Predicated region
    $region18: #{tpu_custom_call.1} parent=1 // pred_check
      %p39 = pneg %p38
    $region19: #{tpu_custom_call.1} parent=1 // pred_check_branch
      %41 = sbr.rel (%p39) target = $region21
    $region20: #{tpu_custom_call.1} parent=1 // pred_region
      %vm42 = vcmask 1024
      %43 = vst.msk [vmem:[#allocation2] sm:$0x3] %vm42, -inf
      %44 = vst.msk [vmem:[#allocation3] sm:$0x3] %vm42, 0.0
      %vm45 = vcmask 254976
      %46 = vst.msk [vmem:[#allocation4] sm:$0x3] %vm45, 0.0
    $region21: #{tpu_custom_call.1} parent=1 // pred_fallthru
      _
    %v47 = vld [vmem:[#allocation8] sm:$0xff]
    %v48 = vld [vmem:[#allocation8 + $0x8] sm:$0xff]
    %v49 = vld [vmem:[#allocation5] sm:$0x1]
    %vm50 = vcmask 261120
    %v52 = vsel %vm50, %v49, 0
    %v55 = vsel %vm50, %v47, 0
    %57 = vmatprep.subr.mxu0 0.0
    %58 = vmatpush1.xpose.msra.mxu0 %v55
    %59 = vmatprep.subr.mxu0 0.0
    %60 = vmatpush1.xpose.msra.mxu0 0.0
    %61 = vmatprep.subr.mxu0 0.0
    %62 = vmatpush1.xpose.msra.mxu0 0.0
    %63 = vmatprep.subr.mxu0 0.0
    %64 = vmatpush1.xpose.msra.mxu0 0.0
    %65 = vmatprep.subr.mxu0 0.0
    %66 = vmatpush1.xpose.msra.mxu0 0.0
    %67 = vmatprep.subr.mxu0 0.0
    %68 = vmatpush1.xpose.msra.mxu0 0.0
    %69 = vmatprep.subr.mxu0 0.0
    %70 = vmatpush1.xpose.msra.mxu0 0.0
    %71 = vmatprep.subr.mxu0 0.0
    %72 = vmatpush1.xpose.msra.mxu0 0.0
    %73 = vmatprep.subr.mxu0 0.0
    %74 = vmatpush1.xpose.msra.mxu0 0.0
    %75 = vmatprep.subr.mxu0 0.0
    %76 = vmatpush1.xpose.msra.mxu0 0.0
    %77 = vmatprep.subr.mxu0 0.0
    %78 = vmatpush1.xpose.msra.mxu0 0.0
    %79 = vmatprep.subr.mxu0 0.0
    %80 = vmatpush1.xpose.msra.mxu0 0.0
    %81 = vmatprep.subr.mxu0 0.0
    %82 = vmatpush1.xpose.msra.mxu0 0.0
    %83 = vmatprep.subr.mxu0 0.0
    %84 = vmatpush1.xpose.msra.mxu0 0.0
    %85 = vmatprep.subr.mxu0 0.0
    %86 = vmatpush1.xpose.msra.mxu0 0.0
    %87 = vmatprep.subr.mxu0 0.0
    %88 = vmatpush1.xpose.msra.mxu0 0.0
    %89 = vmatprep.subr.mxu0 0.0
    %90 = vmatpush1.xpose.msra.mxu0 0.0
    %91 = vmatprep.subr.mxu0 0.0
    %92 = vmatpush1.xpose.msra.mxu0 0.0
    %93 = vmatprep.subr.mxu0 0.0
    %94 = vmatpush1.xpose.msra.mxu0 0.0
    %95 = vmatprep.subr.mxu0 0.0
    %96 = vmatpush1.xpose.msra.mxu0 0.0
    %97 = vmatprep.subr.mxu0 0.0
    %98 = vmatpush1.xpose.msra.mxu0 0.0
    %99 = vmatprep.subr.mxu0 0.0
    %100 = vmatpush1.xpose.msra.mxu0 0.0
    %101 = vmatprep.subr.mxu0 0.0
    %102 = vmatpush1.xpose.msra.mxu0 0.0
    %103 = vmatprep.subr.mxu0 0.0
    %104 = vmatpush1.xpose.msra.mxu0 0.0
    %105 = vmatprep.subr.mxu0 0.0
    %106 = vmatpush1.xpose.msra.mxu0 0.0
    %107 = vmatprep.subr.mxu0 0.0
    %108 = vmatpush1.xpose.msra.mxu0 0.0
    %109 = vmatprep.subr.mxu0 0.0
    %110 = vmatpush1.xpose.msra.mxu0 0.0
    %111 = vmatprep.subr.mxu0 0.0
    %112 = vmatpush1.xpose.msra.mxu0 0.0
    %113 = vmatprep.subr.mxu0 0.0
    %114 = vmatpush1.xpose.msra.mxu0 0.0
    %115 = vmatprep.subr.mxu0 0.0
    %116 = vmatpush1.xpose.msra.mxu0 0.0
    %117 = vmatprep.subr.mxu0 0.0
    %118 = vmatpush1.xpose.msra.mxu0 0.0
    %119 = vmatprep.subr.mxu0 0.0
    %120 = vmatpush1.xpose.msra.mxu0 0.0
    %121 = vmatprep.mubr.f32.mxu0 0.0
    %122 = vmatmul.mubr.f32.gmra.mrb[0].mxu0 %v52
    %v123 = vpop.f32.mrb[0].mxu0
    %v124 = vadd.f32 0.0, %v123
    %v125 = vpop.f32.mrb[0].mxu0
    %126 = vdwg.mxu0
    %v128 = vsel %vm50, %v48, 0
    %130 = vmatprep.subr.mxu0 0.0
    %131 = vmatpush1.xpose.msra.mxu0 %v128
    %132 = vmatprep.subr.mxu0 0.0
    %133 = vmatpush1.xpose.msra.mxu0 0.0
    %134 = vmatprep.subr.mxu0 0.0
    %135 = vmatpush1.xpose.msra.mxu0 0.0
    %136 = vmatprep.subr.mxu0 0.0
    %137 = vmatpush1.xpose.msra.mxu0 0.0
    %138 = vmatprep.subr.mxu0 0.0
    %139 = vmatpush1.xpose.msra.mxu0 0.0
    %140 = vmatprep.subr.mxu0 0.0
    %141 = vmatpush1.xpose.msra.mxu0 0.0
    %142 = vmatprep.subr.mxu0 0.0
    %143 = vmatpush1.xpose.msra.mxu0 0.0
    %144 = vmatprep.subr.mxu0 0.0
    %145 = vmatpush1.xpose.msra.mxu0 0.0
    %146 = vmatprep.subr.mxu0 0.0
    %147 = vmatpush1.xpose.msra.mxu0 0.0
    %148 = vmatprep.subr.mxu0 0.0
    %149 = vmatpush1.xpose.msra.mxu0 0.0
    %150 = vmatprep.subr.mxu0 0.0
    %151 = vmatpush1.xpose.msra.mxu0 0.0
    %152 = vmatprep.subr.mxu0 0.0
    %153 = vmatpush1.xpose.msra.mxu0 0.0
    %154 = vmatprep.subr.mxu0 0.0
    %155 = vmatpush1.xpose.msra.mxu0 0.0
    %156 = vmatprep.subr.mxu0 0.0
    %157 = vmatpush1.xpose.msra.mxu0 0.0
    %158 = vmatprep.subr.mxu0 0.0
    %159 = vmatpush1.xpose.msra.mxu0 0.0
    %160 = vmatprep.subr.mxu0 0.0
    %161 = vmatpush1.xpose.msra.mxu0 0.0
    %162 = vmatprep.subr.mxu0 0.0
    %163 = vmatpush1.xpose.msra.mxu0 0.0
    %164 = vmatprep.subr.mxu0 0.0
    %165 = vmatpush1.xpose.msra.mxu0 0.0
    %166 = vmatprep.subr.mxu0 0.0
    %167 = vmatpush1.xpose.msra.mxu0 0.0
    %168 = vmatprep.subr.mxu0 0.0
    %169 = vmatpush1.xpose.msra.mxu0 0.0
    %170 = vmatprep.subr.mxu0 0.0
    %171 = vmatpush1.xpose.msra.mxu0 0.0
    %172 = vmatprep.subr.mxu0 0.0
    %173 = vmatpush1.xpose.msra.mxu0 0.0
    %174 = vmatprep.subr.mxu0 0.0
    %175 = vmatpush1.xpose.msra.mxu0 0.0
    %176 = vmatprep.subr.mxu0 0.0
    %177 = vmatpush1.xpose.msra.mxu0 0.0
    %178 = vmatprep.subr.mxu0 0.0
    %179 = vmatpush1.xpose.msra.mxu0 0.0
    %180 = vmatprep.subr.mxu0 0.0
    %181 = vmatpush1.xpose.msra.mxu0 0.0
    %182 = vmatprep.subr.mxu0 0.0
    %183 = vmatpush1.xpose.msra.mxu0 0.0
    %184 = vmatprep.subr.mxu0 0.0
    %185 = vmatpush1.xpose.msra.mxu0 0.0
    %186 = vmatprep.subr.mxu0 0.0
    %187 = vmatpush1.xpose.msra.mxu0 0.0
    %188 = vmatprep.subr.mxu0 0.0
    %189 = vmatpush1.xpose.msra.mxu0 0.0
    %190 = vmatprep.subr.mxu0 0.0
    %191 = vmatpush1.xpose.msra.mxu0 0.0
    %192 = vmatprep.subr.mxu0 0.0
    %193 = vmatpush1.xpose.msra.mxu0 0.0
    %194 = vmatprep.mubr.f32.mxu0 0.0
    %195 = vmatmul.mubr.f32.gmra.mrb[0].mxu0 %v52
    %v196 = vpop.f32.mrb[0].mxu0
    %v197 = vadd.f32 0.0, %v196
    %v198 = vpop.f32.mrb[0].mxu0
    %199 = vdwg.mxu0
    %v200 = vld [vmem:[#allocation2] sm:$0x3]
    %v203 = vunpack.c.l.s4 1966171168
    %v204 = vunpack.c.0.s8 %v203
    %v205 = vlaneseq
    %v206 = vshrl.u32 %v205, 7
    %v207 = vsub.s32 %v204, %v206
    %v208 = vrot.slane %v200, %v207
    %v209 = vcombine.high %v208, %v208
    %v211 = vunpack.c.l.s4 1966171168
    %v212 = vunpack.c.0.s8 %v211
    %v213 = vlaneseq
    %v214 = vshrl.u32 %v213, 7
    %v215 = vsub.s32 %v212, %v214
    %v216 = vrot.slane %v208, %v215
    %v218 = vunpack.c.l.s4 1966171168
    %v219 = vunpack.c.0.s8 %v218
    %v220 = vlaneseq
    %v221 = vshrl.u32 %v220, 7
    %v222 = vsub.s32 %v219, %v221
    %v223 = vrot.slane %v209, %v222
    %v226 = vld [vmem:[#allocation3] sm:$0x3]
    %v229 = vunpack.c.l.s4 1966171168
    %v230 = vunpack.c.0.s8 %v229
    %v231 = vlaneseq
    %v232 = vshrl.u32 %v231, 7
    %v233 = vsub.s32 %v230, %v232
    %v234 = vrot.slane %v226, %v233
    %v235 = vcombine.high %v234, %v234
    %v237 = vunpack.c.l.s4 1966171168
    %v238 = vunpack.c.0.s8 %v237
    %v239 = vlaneseq
    %v240 = vshrl.u32 %v239, 7
    %v241 = vsub.s32 %v238, %v240
    %v242 = vrot.slane %v234, %v241
    %v244 = vunpack.c.l.s4 1966171168
    %v245 = vunpack.c.0.s8 %v244
    %v246 = vlaneseq
    %v247 = vshrl.u32 %v246, 7
    %v248 = vsub.s32 %v245, %v247
    %v249 = vrot.slane %v235, %v248
    %v252 = vld [vmem:[#allocation4] sm:$0x3]
    %v255 = vunpack.c.l.s4 1966171168
    %v256 = vunpack.c.0.s8 %v255
    %v257 = vlaneseq
    %v258 = vshrl.u32 %v257, 7
    %v259 = vsub.s32 %v256, %v258
    %v260 = vrot.slane %v252, %v259
    %v261 = vcombine.high %v260, %v260
    %v263 = vunpack.c.l.s4 1966171168
    %v264 = vunpack.c.0.s8 %v263
    %v265 = vlaneseq
    %v266 = vshrl.u32 %v265, 7
    %v267 = vsub.s32 %v264, %v266
    %v268 = vrot.slane %v260, %v267
    %v270 = vunpack.c.l.s4 1966171168
    %v271 = vunpack.c.0.s8 %v270
    %v272 = vlaneseq
    %v273 = vshrl.u32 %v272, 7
    %v274 = vsub.s32 %v271, %v273
    %v275 = vrot.slane %v261, %v274
    %vm278 = vcmask 57344
    %v279 = vsel %vm278, %v124, -inf
    %280 = vmax.xlane.f32.xlu0 %v279
    %v281 = vpop.xlane.xlu0 %280
    %v282 = vsel %vm278, %v197, -inf
    %283 = vmax.xlane.f32.xlu0 %v282
    %v284 = vpop.xlane.xlu0 %283
    %v285 = vmax.f32 %v216, %v281
    %v286 = vmax.f32 %v223, %v284
    %v287 = vsub.f32 %v216, %v285
    %v288 = vsub.f32 %v223, %v286
    %v289 = vmul.f32 %v287, 1.442695
    %v290 = vpow.pop %v289
    %v291 = vmul.f32 %v288, 1.442695
    %v292 = vpow.pop %v291
    %294 = vset.pattern.permute.xlu0 0
    %295 = vperm.xlu0 %294, %v285
    %v296 = vpop.permute.xlu0 %295
    %v298 = vlaneseq
    %v299 = vshrl.u32 %v298, 7
    %v300 = vsub.s32 0, %v299
    %v301 = vrot.slane %v296, %v300
    %303 = vset.pattern.permute.xlu0 0
    %304 = vperm.xlu0 %303, %v286
    %v305 = vpop.permute.xlu0 %304
    %v307 = vlaneseq
    %v308 = vshrl.u32 %v307, 7
    %v309 = vsub.s32 0, %v308
    %v310 = vrot.slane %v305, %v309
    %v311 = vsub.f32 %v124, %v301
    %v312 = vsub.f32 %v197, %v310
    %v313 = vmul.f32 %v311, 1.442695
    %v314 = vpow.pop %v313
    %v315 = vmul.f32 %v312, 1.442695
    %v316 = vpow.pop %v315
    %v317 = vmul.f32 %v290, %v242
    %v318 = vmul.f32 %v292, %v249
    %v319 = vsel %vm278, %v314, 0.0
    %320 = vadd.xlane.f32.xlu0 %v319
    %v321 = vpop.xlane.xlu0 %320
    %v322 = vsel %vm278, %v316, 0.0
    %323 = vadd.xlane.f32.xlu0 %v322
    %v324 = vpop.xlane.xlu0 %323
    %v325 = vadd.f32 %v317, %v321
    %v326 = vadd.f32 %v318, %v324
    %328 = vset.pattern.permute.xlu0 0
    %329 = vperm.xlu0 %328, %v290
    %v330 = vpop.permute.xlu0 %329
    %v332 = vlaneseq
    %v333 = vshrl.u32 %v332, 7
    %v334 = vsub.s32 0, %v333
    %v335 = vrot.slane %v330, %v334
    %337 = vset.pattern.permute.xlu0 0
    %338 = vperm.xlu0 %337, %v292
    %v339 = vpop.permute.xlu0 %338
    %v341 = vlaneseq
    %v342 = vshrl.u32 %v341, 7
    %v343 = vsub.s32 0, %v342
    %v344 = vrot.slane %v339, %v343
    %v345 = vmul.f32 %v335, %v268
    %v346 = vmul.f32 %v344, %v275
    %vm347 = vcmask 64512
    %v349 = vsel %vm347, %v314, 0
    %351 = vmatprep.subr.mxu0 0.0
    %352 = vmatpush1.msra.mxu0 %v47
    %353 = vmatprep.subr.mxu0 0.0
    %354 = vmatpush1.msra.mxu0 0.0
    %355 = vmatprep.subr.mxu0 0.0
    %356 = vmatpush1.msra.mxu0 0.0
    %357 = vmatprep.subr.mxu0 0.0
    %358 = vmatpush1.msra.mxu0 0.0
    %359 = vmatprep.subr.mxu0 0.0
    %360 = vmatpush1.msra.mxu0 0.0
    %361 = vmatprep.subr.mxu0 0.0
    %362 = vmatpush1.msra.mxu0 0.0
    %363 = vmatprep.subr.mxu0 0.0
    %364 = vmatpush1.msra.mxu0 0.0
    %365 = vmatprep.subr.mxu0 0.0
    %366 = vmatpush1.msra.mxu0 0.0
    %367 = vmatprep.subr.mxu0 0.0
    %368 = vmatpush1.msra.mxu0 0.0
    %369 = vmatprep.subr.mxu0 0.0
    %370 = vmatpush1.msra.mxu0 0.0
    %371 = vmatprep.subr.mxu0 0.0
    %372 = vmatpush1.msra.mxu0 0.0
    %373 = vmatprep.subr.mxu0 0.0
    %374 = vmatpush1.msra.mxu0 0.0
    %375 = vmatprep.subr.mxu0 0.0
    %376 = vmatpush1.msra.mxu0 0.0
    %377 = vmatprep.subr.mxu0 0.0
    %378 = vmatpush1.msra.mxu0 0.0
    %379 = vmatprep.subr.mxu0 0.0
    %380 = vmatpush1.msra.mxu0 0.0
    %381 = vmatprep.subr.mxu0 0.0
    %382 = vmatpush1.msra.mxu0 0.0
    %383 = vmatprep.subr.mxu0 0.0
    %384 = vmatpush1.msra.mxu0 0.0
    %385 = vmatprep.subr.mxu0 0.0
    %386 = vmatpush1.msra.mxu0 0.0
    %387 = vmatprep.subr.mxu0 0.0
    %388 = vmatpush1.msra.mxu0 0.0
    %389 = vmatprep.subr.mxu0 0.0
    %390 = vmatpush1.msra.mxu0 0.0
    %391 = vmatprep.subr.mxu0 0.0
    %392 = vmatpush1.msra.mxu0 0.0
    %393 = vmatprep.subr.mxu0 0.0
    %394 = vmatpush1.msra.mxu0 0.0
    %395 = vmatprep.subr.mxu0 0.0
    %396 = vmatpush1.msra.mxu0 0.0
    %397 = vmatprep.subr.mxu0 0.0
    %398 = vmatpush1.msra.mxu0 0.0
    %399 = vmatprep.subr.mxu0 0.0
    %400 = vmatpush1.msra.mxu0 0.0
    %401 = vmatprep.subr.mxu0 0.0
    %402 = vmatpush1.msra.mxu0 0.0
    %403 = vmatprep.subr.mxu0 0.0
    %404 = vmatpush1.msra.mxu0 0.0
    %405 = vmatprep.subr.mxu0 0.0
    %406 = vmatpush1.msra.mxu0 0.0
    %407 = vmatprep.subr.mxu0 0.0
    %408 = vmatpush1.msra.mxu0 0.0
    %409 = vmatprep.subr.mxu0 0.0
    %410 = vmatpush1.msra.mxu0 0.0
    %411 = vmatprep.subr.mxu0 0.0
    %412 = vmatpush1.msra.mxu0 0.0
    %413 = vmatprep.subr.mxu0 0.0
    %414 = vmatpush1.msra.mxu0 0.0
    %415 = vmatprep.mubr.f32.mxu0 0.0
    %416 = vmatmul.mubr.f32.gmra.mrb[0].mxu0 %v349
    %v417 = vpop.f32.mrb[0].mxu0
    %v418 = vadd.f32 0.0, %v417
    %v419 = vpop.f32.mrb[0].mxu0
    %420 = vdwg.mxu0
    %v422 = vsel %vm347, %v316, 0
    %424 = vmatprep.subr.mxu0 0.0
    %425 = vmatpush1.msra.mxu0 %v48
    %426 = vmatprep.subr.mxu0 0.0
    %427 = vmatpush1.msra.mxu0 0.0
    %428 = vmatprep.subr.mxu0 0.0
    %429 = vmatpush1.msra.mxu0 0.0
    %430 = vmatprep.subr.mxu0 0.0
    %431 = vmatpush1.msra.mxu0 0.0
    %432 = vmatprep.subr.mxu0 0.0
    %433 = vmatpush1.msra.mxu0 0.0
    %434 = vmatprep.subr.mxu0 0.0
    %435 = vmatpush1.msra.mxu0 0.0
    %436 = vmatprep.subr.mxu0 0.0
    %437 = vmatpush1.msra.mxu0 0.0
    %438 = vmatprep.subr.mxu0 0.0
    %439 = vmatpush1.msra.mxu0 0.0
    %440 = vmatprep.subr.mxu0 0.0
    %441 = vmatpush1.msra.mxu0 0.0
    %442 = vmatprep.subr.mxu0 0.0
    %443 = vmatpush1.msra.mxu0 0.0
    %444 = vmatprep.subr.mxu0 0.0
    %445 = vmatpush1.msra.mxu0 0.0
    %446 = vmatprep.subr.mxu0 0.0
    %447 = vmatpush1.msra.mxu0 0.0
    %448 = vmatprep.subr.mxu0 0.0
    %449 = vmatpush1.msra.mxu0 0.0
    %450 = vmatprep.subr.mxu0 0.0
    %451 = vmatpush1.msra.mxu0 0.0
    %452 = vmatprep.subr.mxu0 0.0
    %453 = vmatpush1.msra.mxu0 0.0
    %454 = vmatprep.subr.mxu0 0.0
    %455 = vmatpush1.msra.mxu0 0.0
    %456 = vmatprep.subr.mxu0 0.0
    %457 = vmatpush1.msra.mxu0 0.0
    %458 = vmatprep.subr.mxu0 0.0
    %459 = vmatpush1.msra.mxu0 0.0
    %460 = vmatprep.subr.mxu0 0.0
    %461 = vmatpush1.msra.mxu0 0.0
    %462 = vmatprep.subr.mxu0 0.0
    %463 = vmatpush1.msra.mxu0 0.0
    %464 = vmatprep.subr.mxu0 0.0
    %465 = vmatpush1.msra.mxu0 0.0
    %466 = vmatprep.subr.mxu0 0.0
    %467 = vmatpush1.msra.mxu0 0.0
    %468 = vmatprep.subr.mxu0 0.0
    %469 = vmatpush1.msra.mxu0 0.0
    %470 = vmatprep.subr.mxu0 0.0
    %471 = vmatpush1.msra.mxu0 0.0
    %472 = vmatprep.subr.mxu0 0.0
    %473 = vmatpush1.msra.mxu0 0.0
    %474 = vmatprep.subr.mxu0 0.0
    %475 = vmatpush1.msra.mxu0 0.0
    %476 = vmatprep.subr.mxu0 0.0
    %477 = vmatpush1.msra.mxu0 0.0
    %478 = vmatprep.subr.mxu0 0.0
    %479 = vmatpush1.msra.mxu0 0.0
    %480 = vmatprep.subr.mxu0 0.0
    %481 = vmatpush1.msra.mxu0 0.0
    %482 = vmatprep.subr.mxu0 0.0
    %483 = vmatpush1.msra.mxu0 0.0
    %484 = vmatprep.subr.mxu0 0.0
    %485 = vmatpush1.msra.mxu0 0.0
    %486 = vmatprep.subr.mxu0 0.0
    %487 = vmatpush1.msra.mxu0 0.0
    %488 = vmatprep.mubr.f32.mxu0 0.0
    %489 = vmatmul.mubr.f32.gmra.mrb[0].mxu0 %v422
    %v490 = vpop.f32.mrb[0].mxu0
    %v491 = vadd.f32 0.0, %v490
    %v492 = vpop.f32.mrb[0].mxu0
    %493 = vdwg.mxu0
    %v494 = vadd.f32 %v345, %v418
    %v495 = vadd.f32 %v346, %v491
    %v496 = vcombine.low %v285, %v286
    %v498 = vunpack.c.l.s4 1966171168
    %v499 = vunpack.c.0.s8 %v498
    %v500 = vlaneseq
    %v501 = vshrl.u32 %v500, 7
    %v502 = vsub.s32 %v499, %v501
    %v503 = vrot.slane %v496, %v502
    %v505 = vunpack.c.l.s4 1966171168
    %v506 = vunpack.c.0.s8 %v505
    %v507 = vlaneseq
    %v508 = vshrl.u32 %v507, 7
    %v509 = vsub.s32 %v506, %v508
    %v510 = vrot.slane %v503, %v509
    %vm512 = vcmask 1024
    %513 = vst.msk [vmem:[#allocation2] sm:$0x3] %vm512, %v510
    %v516 = vcombine.low %v325, %v326
    %v518 = vunpack.c.l.s4 1966171168
    %v519 = vunpack.c.0.s8 %v518
    %v520 = vlaneseq
    %v521 = vshrl.u32 %v520, 7
    %v522 = vsub.s32 %v519, %v521
    %v523 = vrot.slane %v516, %v522
    %v525 = vunpack.c.l.s4 1966171168
    %v526 = vunpack.c.0.s8 %v525
    %v527 = vlaneseq
    %v528 = vshrl.u32 %v527, 7
    %v529 = vsub.s32 %v526, %v528
    %v530 = vrot.slane %v523, %v529
    %532 = vst.msk [vmem:[#allocation3] sm:$0x3] %vm512, %v530
    %v535 = vcombine.low %v494, %v495
    %v537 = vunpack.c.l.s4 1966171168
    %v538 = vunpack.c.0.s8 %v537
    %v539 = vlaneseq
    %v540 = vshrl.u32 %v539, 7
    %v541 = vsub.s32 %v538, %v540
    %v542 = vrot.slane %v535, %v541
    %v544 = vunpack.c.l.s4 1966171168
    %v545 = vunpack.c.0.s8 %v544
    %v546 = vlaneseq
    %v547 = vshrl.u32 %v546, 7
    %v548 = vsub.s32 %v545, %v547
    %v549 = vrot.slane %v542, %v548
    %vm551 = vcmask 254976
    %552 = vst.msk [vmem:[#allocation4] sm:$0x3] %vm551, %v549
    // Predicated region
    $region22: #{tpu_custom_call.1} parent=1 // pred_check
      %p553 = pneg %p38
    $region23: #{tpu_custom_call.1} parent=1 // pred_check_branch
      %555 = sbr.rel (%p553) target = $region25
    $region24: #{tpu_custom_call.1} parent=1 // pred_region
      %v556 = vld [vmem:[#allocation4] sm:$0x3]
      %v557 = vld [vmem:[#allocation3] sm:$0x3]
      %559 = vset.pattern.permute.xlu0 0
      %560 = vperm.xlu0 %559, %v557
      %v561 = vpop.permute.xlu0 %560
      %v563 = vrcp.pop %v561
      %v564 = vmul.f32 %v556, %v563
      %565 = vst.msk [vmem:[#allocation10] sm:$0x3] %vm551, %v564
    $region25: #{tpu_custom_call.1} parent=1 // pred_fallthru
      _
    // Predicated region
    $region26: #{tpu_custom_call.1} parent=1 // pred_check
      _
    $region27: #{tpu_custom_call.1} parent=1 // pred_check_branch
      %567 = sbr.rel (0) target = $region29
    $region28: #{tpu_custom_call.1} parent=1 // pred_region
      %s569 = ssub.s32 32, 32
      %570 = vsyncadd [#allocation7], %s569
      %s572 = sshll.u32 [#allocation10], 4
      %s573 = int_to_ptr.vmem [resolvable:$true] %s572
      %575 = dma.vmem_to_hbm [thread:$0]  %s573, 32, %s2, [#allocation7]
    $region29: #{tpu_custom_call.1} parent=1 // pred_fallthru
      _
    // Predicated region
    $region30: #{tpu_custom_call.1} parent=1 // pred_check
      _
    $region31: #{tpu_custom_call.1} parent=1 // pred_check_branch
      %577 = sbr.rel (0) target = $region33
    $region32: #{tpu_custom_call.1} parent=1 // pred_region
      %578 = dma.done [#allocation7], 32
    $region33: #{tpu_custom_call.1} parent=1 // pred_fallthru
      _
    %579 = vsyncpa [#allocation6], 1
    %580 = vsyncpa [#allocation9], 1
    %581 = vsyncpa [#allocation7], 1

</llo_original>
